<compile_context>
chip_gen: v7x
topology: tpu7x:2x2x1
jax: 0.10.0
libtpu: 0.0.40
codegen_flags: <defaults>
</compile_context>

<pallas_src>
import functools

import jax
import jax.numpy as jnp
from jax import lax
from jax.experimental import pallas as pl
from jax.experimental.pallas import tpu as pltpu


def _round_up(x: int, m: int) -> int:
    return ((x + m - 1) // m) * m


def _bpr_kernel(ids_ref, utab_ref, itab_ref, out_ref, acc_ref, *,
                n_valid: int, num_neg: int, tiles_per_slice: int, tb: int):
    o = pl.program_id(0)          # outer (megacore) slice
    i = pl.program_id(1)          # inner tile within the slice
    nc = num_neg + 1              # columns: [positive, neg_0, ..., neg_{K-1}]
    n_users = utab_ref.shape[0]
    n_items = itab_ref.shape[0]
    ctype = utab_ref.dtype

    @pl.when(i == 0)
    def _init():
        acc_ref[...] = jnp.zeros_like(acc_ref)

    ids = ids_ref[...]            # (tb, 1 + nc) int32
    utab = utab_ref[...]          # (U, D) resident
    itab = itab_ref[...]          # (I, D) resident

    # --- user rows: one-hot gather on the MXU ---
    uid = ids[:, 0:1]                                                  # (tb, 1)
    u_oh = (lax.broadcasted_iota(jnp.int32, (tb, n_users), 1) == uid).astype(ctype)
    u = jnp.dot(u_oh, utab, preferred_element_type=jnp.float32)        # (tb, D)

    # --- per-column (positive + K negatives): one-hot gather + score ---
    it_iota = lax.broadcasted_iota(jnp.int32, (tb, n_items), 1)
    cols = []
    for c in range(nc):
        idc = ids[:, 1 + c:2 + c]                                      # (tb, 1)
        oh = (it_iota == idc).astype(ctype)
        emb = jnp.dot(oh, itab, preferred_element_type=jnp.float32)    # (tb, D)
        cols.append(jnp.sum(u * emb, axis=1, keepdims=True))           # (tb, 1)
    scores = jnp.concatenate(cols, axis=1)                             # (tb, nc)

    d = scores[:, 0:1] - scores          # column 0 == 0 (dropped at finalize)
    # numerically-stable logsigmoid(d) = min(d, 0) - log1p(exp(-|d|))
    log_sig = jnp.minimum(d, 0.0) - jnp.log1p(jnp.exp(-jnp.abs(d)))

    base = (o * tiles_per_slice + i) * tb
    is_full = base + tb <= n_valid       # every row of this tile is valid

    @pl.when(is_full)
    def _acc_full():
        acc_ref[...] += jnp.sum(log_sig, axis=0, keepdims=True)

    @pl.when(jnp.logical_not(is_full))
    def _acc_ragged():
        row = lax.broadcasted_iota(jnp.int32, (tb, 1), 0) + base
        acc_ref[...] += jnp.sum(jnp.where(row < n_valid, log_sig, 0.0),
                                axis=0, keepdims=True)

    @pl.when(i == tiles_per_slice - 1)
    def _finalize():
        # Drop column 0 (positive-vs-positive == log(0.5)); sum the K
        # negative columns into this slice's scalar partial.
        lane = lax.broadcasted_iota(jnp.int32, (1, nc), 1)
        out_ref[...] = jnp.sum(jnp.where(lane >= 1, acc_ref[...], 0.0),
                               keepdims=True)


def bpr_wishlist_plus_mse_loss(predictions_explicit,
                               targets_explicit,
                               user_emb_table,
                               item_emb_table,
                               user_ids_implicit=None,
                               positive_item_ids_implicit=None,
                               negative_item_ids_implicit=None,
                               lambda_bpr: float = 0.4,
                               max_rows_per_tile=None):
    pred = predictions_explicit.astype(jnp.float32)
    targ = targets_explicit.astype(jnp.float32)
    mse = jnp.mean((pred - targ) ** 2)        # tiny explicit term (wrapper glue)

    has_implicit = (
        lambda_bpr > 0
        and user_ids_implicit is not None and user_ids_implicit.size > 0
        and positive_item_ids_implicit is not None
        and positive_item_ids_implicit.size > 0
        and negative_item_ids_implicit is not None
        and negative_item_ids_implicit.size > 0
    )
    if not has_implicit:
        return mse

    B, K = negative_item_ids_implicit.shape
    nc = K + 1
    U, D = user_emb_table.shape
    I = item_emb_table.shape[0]
    ctype = user_emb_table.dtype              # pass bf16 tables to halve traffic
    itemsize = jnp.dtype(ctype).itemsize

    # Pack the ids into one small int32 array: [uid | pid | nid_0..nid_{K-1}].
    ids = jnp.concatenate(
        [user_ids_implicit.reshape(B, 1).astype(jnp.int32),
         positive_item_ids_implicit.reshape(B, 1).astype(jnp.int32),
         negative_item_ids_implicit.reshape(B, K).astype(jnp.int32)],
        axis=1)                                                  # (B, 1 + nc)

    # ---- generation-aware VMEM budget ----
    try:
        vmem_cap = int(pltpu.get_tpu_info().vmem_capacity_bytes)
    except Exception:
        vmem_cap = 128 * 1024 * 1024
    if vmem_cap <= 64 * 1024 * 1024:          # v7x-class: 64 MiB per TC
        budget, vmem_limit = 20 * 1024 * 1024, 32 * 1024 * 1024
    else:                                     # v5e / v6e: 128 MiB per TC
        budget, vmem_limit = 40 * 1024 * 1024, 64 * 1024 * 1024

    lanes = lambda n: _round_up(n, 128)
    # Resident tables (x2: Pallas may still double-buffer constant-index blocks).
    tab_bytes = 2 * (_round_up(U, 8) + _round_up(I, 8)) * lanes(D) * itemsize
    if tab_bytes > budget // 2:
        # TODO(synk): per-row manual DMA gather fallback for huge tables.
        raise NotImplementedError(
            "embedding tables too large for the VMEM-resident gather path")

    # Per-row VMEM bytes: double-buffered id tile + in-kernel f32 temporaries
    # (one-hot matrices, gathered rows, scores), all lane-padded to 128.
    row_bytes = (2 * lanes(nc + 1) * 4                      # ids tile (x2 buffers)
                 + lanes(U) * 4 + 2 * lanes(I) * 4          # one-hot temporaries
                 + (nc + 2) * lanes(D) * 4                  # u + gathered columns
                 + 4 * lanes(nc) * 4)                       # scores / diff / logsig
    tb_budget = (budget - tab_bytes) // max(row_bytes, 1)
    tb_budget = max(8, min(2048, (tb_budget // 8) * 8))
    if max_rows_per_tile is not None:
        tb_budget = max(8, min(tb_budget, (max_rows_per_tile // 8) * 8))

    # Optional 2-way outer split: megacore on v7x, harmless (sequential) on
    # v5e/v6e.  Only used when each slice gets at least one full tile.
    n_outer = 2 if B >= 2 * tb_budget else 1
    rows_per_slice = -(-B // n_outer)
    tb = min(tb_budget, _round_up(rows_per_slice, 8))
    rows_per_slice = _round_up(rows_per_slice, tb)
    tiles_per_slice = rows_per_slice // tb
    b_pad = n_outer * rows_per_slice
    if b_pad > B:
        ids = jnp.pad(ids, ((0, b_pad - B), (0, 0)))        # tiny int32 pad only

    kernel = functools.partial(
        _bpr_kernel, n_valid=B, num_neg=K,
        tiles_per_slice=tiles_per_slice, tb=tb)

    cost = pl.CostEstimate(
        flops=int(b_pad * (2 * U * D + nc * 2 * I * D + nc * 2 * D + 8 * nc)),
        transcendentals=int(2 * b_pad * nc),
        bytes_accessed=int(b_pad * (nc + 1) * 4 + (U + I) * D * itemsize
                           + n_outer * 4),
    )

    grid_spec = pltpu.PrefetchScalarGridSpec(
        num_scalar_prefetch=0,
        grid=(n_outer, tiles_per_slice),
        in_specs=[
            pl.BlockSpec((tb, nc + 1),
                         lambda o, i: (o * tiles_per_slice + i, 0)),  # id tiles
            pl.BlockSpec((U, D), lambda o, i: (0, 0)),   # resident user table
            pl.BlockSpec((I, D), lambda o, i: (0, 0)),   # resident item table
        ],
        out_specs=pl.BlockSpec((1, 1), lambda o, i: (o, 0)),
        scratch_shapes=[pltpu.VMEM((1, nc), jnp.float32)],   # per-lane partials
    )

    partials = pl.pallas_call(
        kernel,
        out_shape=jax.ShapeDtypeStruct((n_outer, 1), jnp.float32),
        grid_spec=grid_spec,
        compiler_params=pltpu.CompilerParams(
            dimension_semantics=("parallel", "arbitrary"),
            vmem_limit_bytes=vmem_limit),
        cost_estimate=cost,
    )(ids, user_emb_table, item_emb_table)

    bpr = -(jnp.sum(partials) / jnp.float32(B * K))
    return mse + jnp.float32(lambda_bpr) * bpr


def _reference(pred, targ, u_tab, i_tab, uid, pid, nid, lambda_bpr=0.4):
    mse = jnp.mean((pred - targ) ** 2)
    u = u_tab[uid]
    sp = jnp.sum(u * i_tab[pid], axis=-1)
    sn = jnp.sum(u[:, None, :] * i_tab[nid], axis=-1)
    diff = sp[:, None] - sn
    bpr = -jnp.mean(jax.nn.log_sigmoid(diff))
    return mse + lambda_bpr * bpr


if __name__ == "__main__":
    key = jax.random.PRNGKey(0)
    keys = jax.random.split(key, 10)

    num_users, num_items, D = 32, 64, 32
    user_emb_table = jax.random.normal(keys[0], (num_users, D), jnp.float32) * 0.1
    item_emb_table = jax.random.normal(keys[1], (num_items, D), jnp.float32) * 0.1

    B_ex = 8
    pred = jax.random.normal(keys[2], (B_ex,), jnp.float32)
    targ = jax.random.normal(keys[3], (B_ex,), jnp.float32)

    # ---- test 1: tiny implicit batch (single tile, no padding) ----
    B_im, K = 8, 4
    uid = jax.random.randint(keys[4], (B_im,), 0, num_users)
    pid = jax.random.randint(keys[5], (B_im,), 0, num_items)
    nid = jax.random.randint(keys[6], (B_im, K), 0, num_items)

    loss = bpr_wishlist_plus_mse_loss(pred, targ, user_emb_table, item_emb_table,
                                      uid, pid, nid, lambda_bpr=0.4)
    loss = jax.block_until_ready(loss)
    ref = _reference(pred, targ, user_emb_table, item_emb_table,
                     uid, pid, nid, lambda_bpr=0.4)
    assert jnp.allclose(loss, ref, rtol=1e-3, atol=1e-3), (loss, ref)

    # ---- test 2: multi-tile, ragged last tile, 2-way outer (megacore) split ----
    B_im2, K2 = 150, 3
    uid2 = jax.random.randint(keys[7], (B_im2,), 0, num_users)
    pid2 = jax.random.randint(keys[8], (B_im2,), 0, num_items)
    nid2 = jax.random.randint(keys[9], (B_im2, K2), 0, num_items)

    loss2 = bpr_wishlist_plus_mse_loss(pred, targ, user_emb_table, item_emb_table,
                                       uid2, pid2, nid2, lambda_bpr=0.4,
                                       max_rows_per_tile=64)
    loss2 = jax.block_until_ready(loss2)
    ref2 = _reference(pred, targ, user_emb_table, item_emb_table,
                      uid2, pid2, nid2, lambda_bpr=0.4)
    assert jnp.allclose(loss2, ref2, rtol=1e-3, atol=1e-3), (loss2, ref2)

    print("KERNEL_OK")
</pallas_src>

<mosaic_0001>
module attributes {stable_mosaic.version = 11 : i64} {
  func.func @_bpr_kernel(%arg0: i32, %arg1: i32, %arg2: memref<8x6xi32, #tpu.memory_space<vmem>>, %arg3: memref<32x32xf32, #tpu.memory_space<vmem>>, %arg4: memref<64x32xf32, #tpu.memory_space<vmem>>, %arg5: memref<1x1xf32, #tpu.memory_space<vmem>>, %arg6: memref<1x5xf32, #tpu.memory_space<vmem>>) attributes {dimension_semantics = [#tpu.dimension_semantics<parallel>, #tpu.dimension_semantics<arbitrary>], iteration_bounds = array<i64: 1, 1>, scalar_prefetch = 0 : i64, scratch_operands = 1 : i64, tpu.core_type = #tpu.core_type<tc>, window_params = [{transform_indices = @transform_0, window_bounds = array<i64: 8, 6>}, {pipeline_mode = #tpu.pipeline_mode<synchronous>, transform_indices = @transform_1, window_bounds = array<i64: 32, 32>}, {pipeline_mode = #tpu.pipeline_mode<synchronous>, transform_indices = @transform_2, window_bounds = array<i64: 64, 32>}, {transform_indices = @transform_3, window_bounds = array<i64: 1, 1>}]} {
    %c0_i32 = arith.constant 0 : i32
    %0 = arith.cmpi eq, %arg1, %c0_i32 : i32
    %1 = arith.extui %0 : i1 to i32
    %c0_i32_0 = arith.constant 0 : i32
    %2 = arith.cmpi ne, %1, %c0_i32_0 : i32
    scf.if %2 {
      %cst_24 = arith.constant 0.000000e+00 : f32
      %84 = vector.broadcast %cst_24 : f32 to vector<1x5xf32>
      %c0_25 = arith.constant 0 : index
      %c0_26 = arith.constant 0 : index
      %85 = vector.load %arg6[%c0_25, %c0_26] : memref<1x5xf32, #tpu.memory_space<vmem>>, vector<1x5xf32>
      tpu.vector_store %arg6[%c0_25, %c0_26], %84 {strides = array<i32>} : memref<1x5xf32, #tpu.memory_space<vmem>>, vector<1x5xf32>,
    } else {
    }
    %c0 = arith.constant 0 : index
    %c0_1 = arith.constant 0 : index
    %3 = vector.load %arg2[%c0, %c0_1] : memref<8x6xi32, #tpu.memory_space<vmem>>, vector<8x6xi32>
    %c0_2 = arith.constant 0 : index
    %c0_3 = arith.constant 0 : index
    %4 = vector.load %arg3[%c0_2, %c0_3] : memref<32x32xf32, #tpu.memory_space<vmem>>, vector<32x32xf32>
    %c0_4 = arith.constant 0 : index
    %c0_5 = arith.constant 0 : index
    %5 = vector.load %arg4[%c0_4, %c0_5] : memref<64x32xf32, #tpu.memory_space<vmem>>, vector<64x32xf32>
    %6 = vector.extract_strided_slice %3 {offsets = [0, 0], sizes = [8, 1], strides = [1, 1]} : vector<8x6xi32> to vector<8x1xi32>
    %7 = tpu.iota {dimensions = array<i32: 1>} : vector<8x32xi32>
    %8 = vector.broadcast %6 : vector<8x1xi32> to vector<8x32xi32>
    %9 = arith.cmpi eq, %7, %8 : vector<8x32xi32>
    %10 = arith.extui %9 : vector<8x32xi1> to vector<8x32xi32>
    %11 = arith.sitofp %10 : vector<8x32xi32> to vector<8x32xf32>
    %cst = arith.constant dense<0.000000e+00> : vector<8x32xf32>
    %12 = tpu.matmul %11, %4, %cst {dimension_numbers = #tpu.dot_dimension_numbers<[1], [0], [0], [1], [0, 0, 1, 1], [], []>} : vector<8x32xf32>, vector<32x32xf32>, vector<8x32xf32> -> vector<8x32xf32>
    %13 = tpu.iota {dimensions = array<i32: 1>} : vector<8x64xi32>
    %14 = vector.extract_strided_slice %3 {offsets = [0, 1], sizes = [8, 1], strides = [1, 1]} : vector<8x6xi32> to vector<8x1xi32>
    %15 = vector.broadcast %14 : vector<8x1xi32> to vector<8x64xi32>
    %16 = arith.cmpi eq, %13, %15 : vector<8x64xi32>
    %17 = arith.extui %16 : vector<8x64xi1> to vector<8x64xi32>
    %18 = arith.sitofp %17 : vector<8x64xi32> to vector<8x64xf32>
    %cst_6 = arith.constant dense<0.000000e+00> : vector<8x32xf32>
    %19 = tpu.matmul %18, %5, %cst_6 {dimension_numbers = #tpu.dot_dimension_numbers<[1], [0], [0], [1], [0, 0, 1, 1], [], []>} : vector<8x64xf32>, vector<64x32xf32>, vector<8x32xf32> -> vector<8x32xf32>
    %20 = arith.mulf %12, %19 : vector<8x32xf32>
    %cst_7 = arith.constant dense<0.000000e+00> : vector<8xf32>
    %21 = vector.multi_reduction <add>, %20, %cst_7 [1] : vector<8x32xf32> to vector<8xf32>
    %22 = vector.shape_cast %21 : vector<8xf32> to vector<8x1xf32>
    %23 = vector.extract_strided_slice %3 {offsets = [0, 2], sizes = [8, 1], strides = [1, 1]} : vector<8x6xi32> to vector<8x1xi32>
    %24 = vector.broadcast %23 : vector<8x1xi32> to vector<8x64xi32>
    %25 = arith.cmpi eq, %13, %24 : vector<8x64xi32>
    %26 = arith.extui %25 : vector<8x64xi1> to vector<8x64xi32>
    %27 = arith.sitofp %26 : vector<8x64xi32> to vector<8x64xf32>
    %cst_8 = arith.constant dense<0.000000e+00> : vector<8x32xf32>
    %28 = tpu.matmul %27, %5, %cst_8 {dimension_numbers = #tpu.dot_dimension_numbers<[1], [0], [0], [1], [0, 0, 1, 1], [], []>} : vector<8x64xf32>, vector<64x32xf32>, vector<8x32xf32> -> vector<8x32xf32>
    %29 = arith.mulf %12, %28 : vector<8x32xf32>
    %cst_9 = arith.constant dense<0.000000e+00> : vector<8xf32>
    %30 = vector.multi_reduction <add>, %29, %cst_9 [1] : vector<8x32xf32> to vector<8xf32>
    %31 = vector.shape_cast %30 : vector<8xf32> to vector<8x1xf32>
    %32 = vector.extract_strided_slice %3 {offsets = [0, 3], sizes = [8, 1], strides = [1, 1]} : vector<8x6xi32> to vector<8x1xi32>
    %33 = vector.broadcast %32 : vector<8x1xi32> to vector<8x64xi32>
    %34 = arith.cmpi eq, %13, %33 : vector<8x64xi32>
    %35 = arith.extui %34 : vector<8x64xi1> to vector<8x64xi32>
    %36 = arith.sitofp %35 : vector<8x64xi32> to vector<8x64xf32>
    %cst_10 = arith.constant dense<0.000000e+00> : vector<8x32xf32>
    %37 = tpu.matmul %36, %5, %cst_10 {dimension_numbers = #tpu.dot_dimension_numbers<[1], [0], [0], [1], [0, 0, 1, 1], [], []>} : vector<8x64xf32>, vector<64x32xf32>, vector<8x32xf32> -> vector<8x32xf32>
    %38 = arith.mulf %12, %37 : vector<8x32xf32>
    %cst_11 = arith.constant dense<0.000000e+00> : vector<8xf32>
    %39 = vector.multi_reduction <add>, %38, %cst_11 [1] : vector<8x32xf32> to vector<8xf32>
    %40 = vector.shape_cast %39 : vector<8xf32> to vector<8x1xf32>
    %41 = vector.extract_strided_slice %3 {offsets = [0, 4], sizes = [8, 1], strides = [1, 1]} : vector<8x6xi32> to vector<8x1xi32>
    %42 = vector.broadcast %41 : vector<8x1xi32> to vector<8x64xi32>
    %43 = arith.cmpi eq, %13, %42 : vector<8x64xi32>
    %44 = arith.extui %43 : vector<8x64xi1> to vector<8x64xi32>
    %45 = arith.sitofp %44 : vector<8x64xi32> to vector<8x64xf32>
    %cst_12 = arith.constant dense<0.000000e+00> : vector<8x32xf32>
    %46 = tpu.matmul %45, %5, %cst_12 {dimension_numbers = #tpu.dot_dimension_numbers<[1], [0], [0], [1], [0, 0, 1, 1], [], []>} : vector<8x64xf32>, vector<64x32xf32>, vector<8x32xf32> -> vector<8x32xf32>
    %47 = arith.mulf %12, %46 : vector<8x32xf32>
    %cst_13 = arith.constant dense<0.000000e+00> : vector<8xf32>
    %48 = vector.multi_reduction <add>, %47, %cst_13 [1] : vector<8x32xf32> to vector<8xf32>
    %49 = vector.shape_cast %48 : vector<8xf32> to vector<8x1xf32>
    %50 = vector.extract_strided_slice %3 {offsets = [0, 5], sizes = [8, 1], strides = [1, 1]} : vector<8x6xi32> to vector<8x1xi32>
    %51 = vector.broadcast %50 : vector<8x1xi32> to vector<8x64xi32>
    %52 = arith.cmpi eq, %13, %51 : vector<8x64xi32>
    %53 = arith.extui %52 : vector<8x64xi1> to vector<8x64xi32>
    %54 = arith.sitofp %53 : vector<8x64xi32> to vector<8x64xf32>
    %cst_14 = arith.constant dense<0.000000e+00> : vector<8x32xf32>
    %55 = tpu.matmul %54, %5, %cst_14 {dimension_numbers = #tpu.dot_dimension_numbers<[1], [0], [0], [1], [0, 0, 1, 1], [], []>} : vector<8x64xf32>, vector<64x32xf32>, vector<8x32xf32> -> vector<8x32xf32>
    %56 = arith.mulf %12, %55 : vector<8x32xf32>
    %cst_15 = arith.constant dense<0.000000e+00> : vector<8xf32>
    %57 = vector.multi_reduction <add>, %56, %cst_15 [1] : vector<8x32xf32> to vector<8xf32>
    %58 = vector.shape_cast %57 : vector<8xf32> to vector<8x1xf32>
    %59 = tpu.concatenate %22, %31, %40, %49, %58 in 1 : vector<8x1xf32>, vector<8x1xf32>, vector<8x1xf32>, vector<8x1xf32>, vector<8x1xf32> -> vector<8x5xf32>
    %60 = vector.extract_strided_slice %59 {offsets = [0, 0], sizes = [8, 1], strides = [1, 1]} : vector<8x5xf32> to vector<8x1xf32>
    %61 = vector.broadcast %60 : vector<8x1xf32> to vector<8x5xf32>
    %62 = arith.subf %61, %59 : vector<8x5xf32>
    %cst_16 = arith.constant 0.000000e+00 : f32
    %63 = vector.broadcast %cst_16 : f32 to vector<8x5xf32>
    %64 = arith.minimumf %62, %63 : vector<8x5xf32>
    %65 = math.absf %62 : vector<8x5xf32>
    %cst_17 = arith.constant 0.000000e+00 : f32
    %66 = vector.broadcast %cst_17 : f32 to vector<8x5xf32>
    %67 = arith.subf %66, %65 : vector<8x5xf32>
    %68 = math.exp %67 : vector<8x5xf32>
    %69 = math.log1p %68 : vector<8x5xf32>
    %70 = arith.subf %64, %69 : vector<8x5xf32>
    %c1_i32 = arith.constant 1 : i32
    %71 = arith.muli %arg0, %c1_i32 : i32
    %72 = arith.addi %71, %arg1 : i32
    %c8_i32 = arith.constant 8 : i32
    %73 = arith.muli %72, %c8_i32 : i32
    %c8_i32_18 = arith.constant 8 : i32
    %74 = arith.addi %73, %c8_i32_18 : i32
    %c8_i32_19 = arith.constant 8 : i32
    %75 = arith.cmpi sle, %74, %c8_i32_19 : i32
    %76 = arith.extui %75 : i1 to i32
    %c0_i32_20 = arith.constant 0 : i32
    %77 = arith.cmpi ne, %76, %c0_i32_20 : i32
    scf.if %77 {
      %c0_24 = arith.constant 0 : index
      %c0_25 = arith.constant 0 : index
      %84 = vector.load %arg6[%c0_24, %c0_25] : memref<1x5xf32, #tpu.memory_space<vmem>>, vector<1x5xf32>
      %cst_26 = arith.constant dense<0.000000e+00> : vector<5xf32>
      %85 = vector.multi_reduction <add>, %70, %cst_26 [0] : vector<8x5xf32> to vector<5xf32>
      %86 = vector.shape_cast %85 : vector<5xf32> to vector<1x5xf32>
      %87 = arith.addf %84, %86 : vector<1x5xf32>
      %c0_27 = arith.constant 0 : index
      %c0_28 = arith.constant 0 : index
      %88 = vector.load %arg6[%c0_27, %c0_28] : memref<1x5xf32, #tpu.memory_space<vmem>>, vector<1x5xf32>
      tpu.vector_store %arg6[%c0_27, %c0_28], %87 {strides = array<i32>} : memref<1x5xf32, #tpu.memory_space<vmem>>, vector<1x5xf32>,
    } else {
    }
    %true = arith.constant true
    %78 = arith.xori %75, %true : i1
    %79 = arith.extui %78 : i1 to i32
    %c0_i32_21 = arith.constant 0 : i32
    %80 = arith.cmpi ne, %79, %c0_i32_21 : i32
    scf.if %80 {
      %84 = tpu.iota {dimensions = array<i32: 0>} : vector<8x1xi32>
      %85 = vector.broadcast %73 : i32 to vector<8x1xi32>
      %86 = arith.addi %84, %85 : vector<8x1xi32>
      %c0_24 = arith.constant 0 : index
      %c0_25 = arith.constant 0 : index
      %87 = vector.load %arg6[%c0_24, %c0_25] : memref<1x5xf32, #tpu.memory_space<vmem>>, vector<1x5xf32>
      %c8_i32_26 = arith.constant 8 : i32
      %88 = vector.broadcast %c8_i32_26 : i32 to vector<8x1xi32>
      %89 = arith.cmpi slt, %86, %88 : vector<8x1xi32>
      %cst_27 = arith.constant 0.000000e+00 : f32
      %90 = vector.shape_cast %89 : vector<8x1xi1> to vector<8x1xi1>
      %91 = vector.broadcast %90 : vector<8x1xi1> to vector<8x5xi1>
      %92 = vector.broadcast %cst_27 : f32 to vector<8x5xf32>
      %93 = arith.select %91, %70, %92 : vector<8x5xi1>, vector<8x5xf32>
      %cst_28 = arith.constant dense<0.000000e+00> : vector<5xf32>
      %94 = vector.multi_reduction <add>, %93, %cst_28 [0] : vector<8x5xf32> to vector<5xf32>
      %95 = vector.shape_cast %94 : vector<5xf32> to vector<1x5xf32>
      %96 = arith.addf %87, %95 : vector<1x5xf32>
      %c0_29 = arith.constant 0 : index
      %c0_30 = arith.constant 0 : index
      %97 = vector.load %arg6[%c0_29, %c0_30] : memref<1x5xf32, #tpu.memory_space<vmem>>, vector<1x5xf32>
      tpu.vector_store %arg6[%c0_29, %c0_30], %96 {strides = array<i32>} : memref<1x5xf32, #tpu.memory_space<vmem>>, vector<1x5xf32>,
    } else {
    }
    %c0_i32_22 = arith.constant 0 : i32
    %81 = arith.cmpi eq, %arg1, %c0_i32_22 : i32
    %82 = arith.extui %81 : i1 to i32
    %c0_i32_23 = arith.constant 0 : i32
    %83 = arith.cmpi ne, %82, %c0_i32_23 : i32
    scf.if %83 {
      %84 = tpu.iota {dimensions = array<i32: 1>} : vector<1x5xi32>
      %c1_i32_24 = arith.constant 1 : i32
      %85 = vector.broadcast %c1_i32_24 : i32 to vector<1x5xi32>
      %86 = arith.cmpi sge, %84, %85 : vector<1x5xi32>
      %c0_25 = arith.constant 0 : index
      %c0_26 = arith.constant 0 : index
      %87 = vector.load %arg6[%c0_25, %c0_26] : memref<1x5xf32, #tpu.memory_space<vmem>>, vector<1x5xf32>
      %cst_27 = arith.constant 0.000000e+00 : f32
      %88 = vector.broadcast %cst_27 : f32 to vector<1x5xf32>
      %89 = arith.select %86, %87, %88 : vector<1x5xi1>, vector<1x5xf32>
      %90 = vector.shape_cast %89 : vector<1x5xf32> to vector<1x1x5xf32>
      %cst_28 = arith.constant dense<0.000000e+00> : vector<1xf32>
      %91 = vector.multi_reduction <add>, %90, %cst_28 [1, 2] : vector<1x1x5xf32> to vector<1xf32>
      %92 = vector.shape_cast %91 : vector<1xf32> to vector<1x1x1xf32>
      %93 = vector.extract %92[0, 0, 0] : f32 from vector<1x1x1xf32>
      %94 = vector.broadcast %93 : f32 to vector<1x1xf32>
      %c0_29 = arith.constant 0 : index
      %c0_30 = arith.constant 0 : index
      %95 = vector.load %arg5[%c0_29, %c0_30] : memref<1x1xf32, #tpu.memory_space<vmem>>, vector<1x1xf32>
      tpu.vector_store %arg5[%c0_29, %c0_30], %94 {strides = array<i32>} : memref<1x1xf32, #tpu.memory_space<vmem>>, vector<1x1xf32>,
    } else {
    }
    return
  }
  func.func @transform_0(%arg0: i32, %arg1: i32) -> (i32, i32) {
    %c1_i32 = arith.constant 1 : i32
    %0 = arith.muli %arg0, %c1_i32 : i32
    %1 = arith.addi %0, %arg1 : i32
    %c0_i32 = arith.constant 0 : i32
    %c0_i32_0 = arith.constant 0 : i32
    return %1, %c0_i32 : i32, i32
  }
  func.func @transform_1(%arg0: i32, %arg1: i32) -> (i32, i32) {
    %c0_i32 = arith.constant 0 : i32
    %c0_i32_0 = arith.constant 0 : i32
    %c0_i32_1 = arith.constant 0 : i32
    return %c0_i32, %c0_i32_0 : i32, i32
  }
  func.func @transform_2(%arg0: i32, %arg1: i32) -> (i32, i32) {
    %c0_i32 = arith.constant 0 : i32
    %c0_i32_0 = arith.constant 0 : i32
    %c0_i32_1 = arith.constant 0 : i32
    return %c0_i32, %c0_i32_0 : i32, i32
  }
  func.func @transform_3(%arg0: i32, %arg1: i32) -> (i32, i32) {
    %c0_i32 = arith.constant 0 : i32
    %c0_i32_0 = arith.constant 0 : i32
    return %arg0, %c0_i32 : i32, i32
  }
}

</mosaic_0001>

<llo_original>
// kernel: tpu_custom_call.1
$region0: #{tpu_custom_call.1}
  #allocation0 [shape = 'u32[]', space=smem, size = 0x4, offset = 0x4, fixed_abs, tag = 'smem constant byte address 0x4 - core index']
  #allocation1 [shape = 'u32[144,128]{1,0:T(1,128)}', space=vmem, size = 0x12000, scoped, tag = 'internal scratch']
  #allocation2 [shape = 'f32[1,5]{1,0:T(1,128)}', space=vmem, size = 0x200, scoped, tag = 'scratch operand']
  %s0 = inlined_call_operand.hbm [shape: s32[8,6], index: 0, kind: input, shape index: {}]
  %s1 = inlined_call_operand.hbm [shape: f32[32,32], index: 1, kind: input, shape index: {}]
  %s2 = inlined_call_operand.hbm [shape: f32[64,32], index: 2, kind: input, shape index: {}]
  %s3 = inlined_call_operand.hbm [shape: f32[1,1], index: 3, kind: output, shape index: {}]
  %s4 = sld [smem:[#allocation0]]
  $region50: #{tpu_custom_call.1} parent=0
    _
  %s6 = ssub.s32 1, %s4
  %s7 = scalar_select 0, %s6, %s4
  $region1: #{tpu_custom_call.1} parent=0
    #allocation3 [shape = 'u8[4096]{0}', space=vmem, size = 0x1000, scoped, tag = 'input window, operand 0, single buffered']
    #allocation4 [shape = 's32[1]{0}', space=sflag, size = 0x4, scoped, tag = 'scoped memory for tpu_custom_call.1']
    #allocation5 [shape = 's32[1]{0}', space=sflag, size = 0x4, scoped, tag = 'scoped memory for tpu_custom_call.1']
    #allocation6 [shape = 'u8[16384]{0}', space=vmem, size = 0x4000, scoped, tag = 'input window, operand 1, single buffered']
    #allocation7 [shape = 's32[1]{0}', space=sflag, size = 0x4, scoped, tag = 'scoped memory for tpu_custom_call.1']
    #allocation8 [shape = 'u8[32768]{0}', space=vmem, size = 0x8000, scoped, tag = 'input window, operand 2, single buffered']
    #allocation9 [shape = 'u8[512]{0}', space=vmem, size = 0x400, scoped, tag = 'output window, operand 0, single buffered']
    %8 = vsyncpa [#allocation4], 0
    %9 = vsyncpa [#allocation7], 0
    %10 = vsyncpa [#allocation5], 0
    // Predicated region
    $region2: #{tpu_custom_call.1} parent=1 // pred_check
      _
    $region3: #{tpu_custom_call.1} parent=1 // pred_check_branch
      %12 = sbr.rel (0) target = $region5
    $region4: #{tpu_custom_call.1} parent=1 // pred_region
      %s13 = sadd.s32 0, 0
      %s15 = ssub.s32 128, 128
      %16 = vsyncadd [#allocation4], %s15
      %s17 = smul.addr %s13, 128
      %s18 = scalar_lea.hbm %s0, %s17
      %s20 = sshll.u32 [#allocation3], 4
      %s21 = int_to_ptr.vmem [resolvable:$true] %s20
      %23 = dma.hbm_to_vmem [thread:$0]  %s18, 128, %s21, [#allocation4]
    $region5: #{tpu_custom_call.1} parent=1 // pred_fallthru
      _
    // Predicated region
    $region6: #{tpu_custom_call.1} parent=1 // pred_check
      _
    $region7: #{tpu_custom_call.1} parent=1 // pred_check_branch
      %25 = sbr.rel (0) target = $region9
    $region8: #{tpu_custom_call.1} parent=1 // pred_region
      %s27 = ssub.s32 512, 512
      %28 = vsyncadd [#allocation7], %s27
      %s29 = sshll.u32 [#allocation6], 4
      %s30 = int_to_ptr.vmem [resolvable:$true] %s29
      %35 = dma.hbm_to_vmem [thread:$0]  %s1, 512, %s30, [#allocation7], 128, 128, 8
    $region9: #{tpu_custom_call.1} parent=1 // pred_fallthru
      _
    // Predicated region
    $region10: #{tpu_custom_call.1} parent=1 // pred_check
      _
    $region11: #{tpu_custom_call.1} parent=1 // pred_check_branch
      %37 = sbr.rel (0) target = $region13
    $region12: #{tpu_custom_call.1} parent=1 // pred_region
      %s39 = ssub.s32 1024, 1024
      %40 = vsyncadd [#allocation7], %s39
      %s41 = sshll.u32 [#allocation8], 4
      %s42 = int_to_ptr.vmem [resolvable:$true] %s41
      %47 = dma.hbm_to_vmem [thread:$0]  %s2, 1024, %s42, [#allocation7], 128, 128, 8
    $region13: #{tpu_custom_call.1} parent=1 // pred_fallthru
      _
    // Predicated region
    $region14: #{tpu_custom_call.1} parent=1 // pred_check
      _
    $region15: #{tpu_custom_call.1} parent=1 // pred_check_branch
      %49 = sbr.rel (0) target = $region17
    $region16: #{tpu_custom_call.1} parent=1 // pred_region
      %50 = dma.done [#allocation4], 128
    $region17: #{tpu_custom_call.1} parent=1 // pred_fallthru
      _
    // Predicated region
    $region18: #{tpu_custom_call.1} parent=1 // pred_check
      _
    $region19: #{tpu_custom_call.1} parent=1 // pred_check_branch
      %52 = sbr.rel (0) target = $region21
    $region20: #{tpu_custom_call.1} parent=1 // pred_region
      %53 = dma.done [#allocation7], 512
    $region21: #{tpu_custom_call.1} parent=1 // pred_fallthru
      _
    // Predicated region
    $region22: #{tpu_custom_call.1} parent=1 // pred_check
      _
    $region23: #{tpu_custom_call.1} parent=1 // pred_check_branch
      %55 = sbr.rel (0) target = $region25
    $region24: #{tpu_custom_call.1} parent=1 // pred_region
      %56 = dma.done [#allocation7], 1024
    $region25: #{tpu_custom_call.1} parent=1 // pred_fallthru
      _
    %s57 = sadd.s32 0, 0
    %p58 = scmp.eq.s32.totalorder 0, 0
    // Predicated region
    $region26: #{tpu_custom_call.1} parent=1 // pred_check
      %p59 = pneg %p58
    $region27: #{tpu_custom_call.1} parent=1 // pred_check_branch
      %61 = sbr.rel (%p59) target = $region29
    $region28: #{tpu_custom_call.1} parent=1 // pred_region
      %vm62 = vcmask 32768
      %63 = vst.msk [vmem:[#allocation2] sm:$0x1] %vm62, 0.0
    $region29: #{tpu_custom_call.1} parent=1 // pred_fallthru
      _
    %v64 = vld [vmem:[#allocation3] sm:$0xff]
    %v65 = vld [vmem:[#allocation6] sm:$0xff]
    %v66 = vld [vmem:[#allocation6 + $0x8] sm:$0xff]
    %v67 = vld [vmem:[#allocation6 + $0x10] sm:$0xff]
    %v68 = vld [vmem:[#allocation6 + $0x18] sm:$0xff]
    %v69 = vld [vmem:[#allocation8] sm:$0xff]
    %v70 = vld [vmem:[#allocation8 + $0x8] sm:$0xff]
    %v71 = vld [vmem:[#allocation8 + $0x10] sm:$0xff]
    %v72 = vld [vmem:[#allocation8 + $0x18] sm:$0xff]
    %v73 = vld [vmem:[#allocation8 + $0x20] sm:$0xff]
    %v74 = vld [vmem:[#allocation8 + $0x28] sm:$0xff]
    %v75 = vld [vmem:[#allocation8 + $0x30] sm:$0xff]
    %v76 = vld [vmem:[#allocation8 + $0x38] sm:$0xff]
    %v77 = vlaneseq
    %v78 = vand.u32 %v77, 127
    %79 = vset.pattern.permute.xlu0 0
    %80 = vperm.xlu0 %79, %v64
    %v81 = vpop.permute.xlu0 %80
    %vm82 = vcmp.eq.s32.totalorder %v78, %v81
    %v83 = vsel %vm82, 1, 0
    %v84 = vcvt.s32.f32 %v83
    %vm85 = vcmask 261120
    %v87 = vsel %vm85, %v84, 0
    %89 = vmatprep.subr.mxu0 0.0
    %90 = vmatpush1.msra.mxu0 %v65
    %91 = vmatprep.subr.mxu0 0.0
    %92 = vmatpush1.msra.mxu0 %v66
    %93 = vmatprep.subr.mxu0 0.0
    %94 = vmatpush1.msra.mxu0 %v67
    %95 = vmatprep.subr.mxu0 0.0
    %96 = vmatpush1.msra.mxu0 %v68
    %97 = vmatprep.subr.mxu0 0.0
    %98 = vmatpush1.msra.mxu0 0.0
    %99 = vmatprep.subr.mxu0 0.0
    %100 = vmatpush1.msra.mxu0 0.0
    %101 = vmatprep.subr.mxu0 0.0
    %102 = vmatpush1.msra.mxu0 0.0
    %103 = vmatprep.subr.mxu0 0.0
    %104 = vmatpush1.msra.mxu0 0.0
    %105 = vmatprep.subr.mxu0 0.0
    %106 = vmatpush1.msra.mxu0 0.0
    %107 = vmatprep.subr.mxu0 0.0
    %108 = vmatpush1.msra.mxu0 0.0
    %109 = vmatprep.subr.mxu0 0.0
    %110 = vmatpush1.msra.mxu0 0.0
    %111 = vmatprep.subr.mxu0 0.0
    %112 = vmatpush1.msra.mxu0 0.0
    %113 = vmatprep.subr.mxu0 0.0
    %114 = vmatpush1.msra.mxu0 0.0
    %115 = vmatprep.subr.mxu0 0.0
    %116 = vmatpush1.msra.mxu0 0.0
    %117 = vmatprep.subr.mxu0 0.0
    %118 = vmatpush1.msra.mxu0 0.0
    %119 = vmatprep.subr.mxu0 0.0
    %120 = vmatpush1.msra.mxu0 0.0
    %121 = vmatprep.subr.mxu0 0.0
    %122 = vmatpush1.msra.mxu0 0.0
    %123 = vmatprep.subr.mxu0 0.0
    %124 = vmatpush1.msra.mxu0 0.0
    %125 = vmatprep.subr.mxu0 0.0
    %126 = vmatpush1.msra.mxu0 0.0
    %127 = vmatprep.subr.mxu0 0.0
    %128 = vmatpush1.msra.mxu0 0.0
    %129 = vmatprep.subr.mxu0 0.0
    %130 = vmatpush1.msra.mxu0 0.0
    %131 = vmatprep.subr.mxu0 0.0
    %132 = vmatpush1.msra.mxu0 0.0
    %133 = vmatprep.subr.mxu0 0.0
    %134 = vmatpush1.msra.mxu0 0.0
    %135 = vmatprep.subr.mxu0 0.0
    %136 = vmatpush1.msra.mxu0 0.0
    %137 = vmatprep.subr.mxu0 0.0
    %138 = vmatpush1.msra.mxu0 0.0
    %139 = vmatprep.subr.mxu0 0.0
    %140 = vmatpush1.msra.mxu0 0.0
    %141 = vmatprep.subr.mxu0 0.0
    %142 = vmatpush1.msra.mxu0 0.0
    %143 = vmatprep.subr.mxu0 0.0
    %144 = vmatpush1.msra.mxu0 0.0
    %145 = vmatprep.subr.mxu0 0.0
    %146 = vmatpush1.msra.mxu0 0.0
    %147 = vmatprep.subr.mxu0 0.0
    %148 = vmatpush1.msra.mxu0 0.0
    %149 = vmatprep.subr.mxu0 0.0
    %150 = vmatpush1.msra.mxu0 0.0
    %151 = vmatprep.subr.mxu0 0.0
    %152 = vmatpush1.msra.mxu0 0.0
    %153 = vmatprep.mubr.f32.mxu0 0.0
    %154 = vmatmul.mubr.f32.gmra.mrb[0].mxu0 %v87
    %v155 = vpop.f32.mrb[0].mxu0
    %v156 = vadd.f32 0.0, %v155
    %v157 = vpop.f32.mrb[0].mxu0
    %158 = vdwg.mxu0
    %159 = vset.pattern.permute.xlu0 1
    %160 = vperm.xlu0 %159, %v64
    %v161 = vpop.permute.xlu0 %160
    %vm162 = vcmp.eq.s32.totalorder %v78, %v161
    %v163 = vsel %vm162, 1, 0
    %v164 = vcvt.s32.f32 %v163
    %vm165 = vcmask 523264
    %v167 = vsel %vm165, %v164, 0
    %169 = vmatprep.subr.mxu0 0.0
    %170 = vmatpush1.msra.mxu0 %v69
    %171 = vmatprep.subr.mxu0 0.0
    %172 = vmatpush1.msra.mxu0 %v70
    %173 = vmatprep.subr.mxu0 0.0
    %174 = vmatpush1.msra.mxu0 %v71
    %175 = vmatprep.subr.mxu0 0.0
    %176 = vmatpush1.msra.mxu0 %v72
    %177 = vmatprep.subr.mxu0 0.0
    %178 = vmatpush1.msra.mxu0 %v73
    %179 = vmatprep.subr.mxu0 0.0
    %180 = vmatpush1.msra.mxu0 %v74
    %181 = vmatprep.subr.mxu0 0.0
    %182 = vmatpush1.msra.mxu0 %v75
    %183 = vmatprep.subr.mxu0 0.0
    %184 = vmatpush1.msra.mxu0 %v76
    %185 = vmatprep.subr.mxu0 0.0
    %186 = vmatpush1.msra.mxu0 0.0
    %187 = vmatprep.subr.mxu0 0.0
    %188 = vmatpush1.msra.mxu0 0.0
    %189 = vmatprep.subr.mxu0 0.0
    %190 = vmatpush1.msra.mxu0 0.0
    %191 = vmatprep.subr.mxu0 0.0
    %192 = vmatpush1.msra.mxu0 0.0
    %193 = vmatprep.subr.mxu0 0.0
    %194 = vmatpush1.msra.mxu0 0.0
    %195 = vmatprep.subr.mxu0 0.0
    %196 = vmatpush1.msra.mxu0 0.0
    %197 = vmatprep.subr.mxu0 0.0
    %198 = vmatpush1.msra.mxu0 0.0
    %199 = vmatprep.subr.mxu0 0.0
    %200 = vmatpush1.msra.mxu0 0.0
    %201 = vmatprep.subr.mxu0 0.0
    %202 = vmatpush1.msra.mxu0 0.0
    %203 = vmatprep.subr.mxu0 0.0
    %204 = vmatpush1.msra.mxu0 0.0
    %205 = vmatprep.subr.mxu0 0.0
    %206 = vmatpush1.msra.mxu0 0.0
    %207 = vmatprep.subr.mxu0 0.0
    %208 = vmatpush1.msra.mxu0 0.0
    %209 = vmatprep.subr.mxu0 0.0
    %210 = vmatpush1.msra.mxu0 0.0
    %211 = vmatprep.subr.mxu0 0.0
    %212 = vmatpush1.msra.mxu0 0.0
    %213 = vmatprep.subr.mxu0 0.0
    %214 = vmatpush1.msra.mxu0 0.0
    %215 = vmatprep.subr.mxu0 0.0
    %216 = vmatpush1.msra.mxu0 0.0
    %217 = vmatprep.subr.mxu0 0.0
    %218 = vmatpush1.msra.mxu0 0.0
    %219 = vmatprep.subr.mxu0 0.0
    %220 = vmatpush1.msra.mxu0 0.0
    %221 = vmatprep.subr.mxu0 0.0
    %222 = vmatpush1.msra.mxu0 0.0
    %223 = vmatprep.subr.mxu0 0.0
    %224 = vmatpush1.msra.mxu0 0.0
    %225 = vmatprep.subr.mxu0 0.0
    %226 = vmatpush1.msra.mxu0 0.0
    %227 = vmatprep.subr.mxu0 0.0
    %228 = vmatpush1.msra.mxu0 0.0
    %229 = vmatprep.subr.mxu0 0.0
    %230 = vmatpush1.msra.mxu0 0.0
    %231 = vmatprep.subr.mxu0 0.0
    %232 = vmatpush1.msra.mxu0 0.0
    %233 = vmatprep.mubr.f32.mxu0 0.0
    %234 = vmatmul.mubr.f32.gmra.mrb[0].mxu0 %v167
    %v235 = vpop.f32.mrb[0].mxu0
    %v236 = vadd.f32 0.0, %v235
    %v237 = vpop.f32.mrb[0].mxu0
    %238 = vdwg.mxu0
    %v239 = vmul.f32 %v156, %v236
    %v240 = vsel %vm85, %v239, 0.0
    %241 = vadd.xlane.f32.xlu0 %v240
    %v242 = vpop.xlane.xlu0 %241
    %243 = vset.pattern.permute.xlu0 2
    %244 = vperm.xlu0 %243, %v64
    %v245 = vpop.permute.xlu0 %244
    %vm246 = vcmp.eq.s32.totalorder %v78, %v245
    %v247 = vsel %vm246, 1, 0
    %v248 = vcvt.s32.f32 %v247
    %v250 = vsel %vm165, %v248, 0
    %252 = vmatprep.subr.mxu0 0.0
    %253 = vmatpush1.msra.mxu0 %v69
    %254 = vmatprep.subr.mxu0 0.0
    %255 = vmatpush1.msra.mxu0 %v70
    %256 = vmatprep.subr.mxu0 0.0
    %257 = vmatpush1.msra.mxu0 %v71
    %258 = vmatprep.subr.mxu0 0.0
    %259 = vmatpush1.msra.mxu0 %v72
    %260 = vmatprep.subr.mxu0 0.0
    %261 = vmatpush1.msra.mxu0 %v73
    %262 = vmatprep.subr.mxu0 0.0
    %263 = vmatpush1.msra.mxu0 %v74
    %264 = vmatprep.subr.mxu0 0.0
    %265 = vmatpush1.msra.mxu0 %v75
    %266 = vmatprep.subr.mxu0 0.0
    %267 = vmatpush1.msra.mxu0 %v76
    %268 = vmatprep.subr.mxu0 0.0
    %269 = vmatpush1.msra.mxu0 0.0
    %270 = vmatprep.subr.mxu0 0.0
    %271 = vmatpush1.msra.mxu0 0.0
    %272 = vmatprep.subr.mxu0 0.0
    %273 = vmatpush1.msra.mxu0 0.0
    %274 = vmatprep.subr.mxu0 0.0
    %275 = vmatpush1.msra.mxu0 0.0
    %276 = vmatprep.subr.mxu0 0.0
    %277 = vmatpush1.msra.mxu0 0.0
    %278 = vmatprep.subr.mxu0 0.0
    %279 = vmatpush1.msra.mxu0 0.0
    %280 = vmatprep.subr.mxu0 0.0
    %281 = vmatpush1.msra.mxu0 0.0
    %282 = vmatprep.subr.mxu0 0.0
    %283 = vmatpush1.msra.mxu0 0.0
    %284 = vmatprep.subr.mxu0 0.0
    %285 = vmatpush1.msra.mxu0 0.0
    %286 = vmatprep.subr.mxu0 0.0
    %287 = vmatpush1.msra.mxu0 0.0
    %288 = vmatprep.subr.mxu0 0.0
    %289 = vmatpush1.msra.mxu0 0.0
    %290 = vmatprep.subr.mxu0 0.0
    %291 = vmatpush1.msra.mxu0 0.0
    %292 = vmatprep.subr.mxu0 0.0
    %293 = vmatpush1.msra.mxu0 0.0
    %294 = vmatprep.subr.mxu0 0.0
    %295 = vmatpush1.msra.mxu0 0.0
    %296 = vmatprep.subr.mxu0 0.0
    %297 = vmatpush1.msra.mxu0 0.0
    %298 = vmatprep.subr.mxu0 0.0
    %299 = vmatpush1.msra.mxu0 0.0
    %300 = vmatprep.subr.mxu0 0.0
    %301 = vmatpush1.msra.mxu0 0.0
    %302 = vmatprep.subr.mxu0 0.0
    %303 = vmatpush1.msra.mxu0 0.0
    %304 = vmatprep.subr.mxu0 0.0
    %305 = vmatpush1.msra.mxu0 0.0
    %306 = vmatprep.subr.mxu0 0.0
    %307 = vmatpush1.msra.mxu0 0.0
    %308 = vmatprep.subr.mxu0 0.0
    %309 = vmatpush1.msra.mxu0 0.0
    %310 = vmatprep.subr.mxu0 0.0
    %311 = vmatpush1.msra.mxu0 0.0
    %312 = vmatprep.subr.mxu0 0.0
    %313 = vmatpush1.msra.mxu0 0.0
    %314 = vmatprep.subr.mxu0 0.0
    %315 = vmatpush1.msra.mxu0 0.0
    %316 = vmatprep.mubr.f32.mxu0 0.0
    %317 = vmatmul.mubr.f32.gmra.mrb[0].mxu0 %v250
    %v318 = vpop.f32.mrb[0].mxu0
    %v319 = vadd.f32 0.0, %v318
    %v320 = vpop.f32.mrb[0].mxu0
    %321 = vdwg.mxu0
    %v322 = vmul.f32 %v156, %v319
    %v323 = vsel %vm85, %v322, 0.0
    %324 = vadd.xlane.f32.xlu0 %v323
    %v325 = vpop.xlane.xlu0 %324
    %326 = vset.pattern.permute.xlu0 3
    %327 = vperm.xlu0 %326, %v64
    %v328 = vpop.permute.xlu0 %327
    %vm329 = vcmp.eq.s32.totalorder %v78, %v328
    %v330 = vsel %vm329, 1, 0
    %v331 = vcvt.s32.f32 %v330
    %v333 = vsel %vm165, %v331, 0
    %335 = vmatprep.subr.mxu0 0.0
    %336 = vmatpush1.msra.mxu0 %v69
    %337 = vmatprep.subr.mxu0 0.0
    %338 = vmatpush1.msra.mxu0 %v70
    %339 = vmatprep.subr.mxu0 0.0
    %340 = vmatpush1.msra.mxu0 %v71
    %341 = vmatprep.subr.mxu0 0.0
    %342 = vmatpush1.msra.mxu0 %v72
    %343 = vmatprep.subr.mxu0 0.0
    %344 = vmatpush1.msra.mxu0 %v73
    %345 = vmatprep.subr.mxu0 0.0
    %346 = vmatpush1.msra.mxu0 %v74
    %347 = vmatprep.subr.mxu0 0.0
    %348 = vmatpush1.msra.mxu0 %v75
    %349 = vmatprep.subr.mxu0 0.0
    %350 = vmatpush1.msra.mxu0 %v76
    %351 = vmatprep.subr.mxu0 0.0
    %352 = vmatpush1.msra.mxu0 0.0
    %353 = vmatprep.subr.mxu0 0.0
    %354 = vmatpush1.msra.mxu0 0.0
    %355 = vmatprep.subr.mxu0 0.0
    %356 = vmatpush1.msra.mxu0 0.0
    %357 = vmatprep.subr.mxu0 0.0
    %358 = vmatpush1.msra.mxu0 0.0
    %359 = vmatprep.subr.mxu0 0.0
    %360 = vmatpush1.msra.mxu0 0.0
    %361 = vmatprep.subr.mxu0 0.0
    %362 = vmatpush1.msra.mxu0 0.0
    %363 = vmatprep.subr.mxu0 0.0
    %364 = vmatpush1.msra.mxu0 0.0
    %365 = vmatprep.subr.mxu0 0.0
    %366 = vmatpush1.msra.mxu0 0.0
    %367 = vmatprep.subr.mxu0 0.0
    %368 = vmatpush1.msra.mxu0 0.0
    %369 = vmatprep.subr.mxu0 0.0
    %370 = vmatpush1.msra.mxu0 0.0
    %371 = vmatprep.subr.mxu0 0.0
    %372 = vmatpush1.msra.mxu0 0.0
    %373 = vmatprep.subr.mxu0 0.0
    %374 = vmatpush1.msra.mxu0 0.0
    %375 = vmatprep.subr.mxu0 0.0
    %376 = vmatpush1.msra.mxu0 0.0
    %377 = vmatprep.subr.mxu0 0.0
    %378 = vmatpush1.msra.mxu0 0.0
    %379 = vmatprep.subr.mxu0 0.0
    %380 = vmatpush1.msra.mxu0 0.0
    %381 = vmatprep.subr.mxu0 0.0
    %382 = vmatpush1.msra.mxu0 0.0
    %383 = vmatprep.subr.mxu0 0.0
    %384 = vmatpush1.msra.mxu0 0.0
    %385 = vmatprep.subr.mxu0 0.0
    %386 = vmatpush1.msra.mxu0 0.0
    %387 = vmatprep.subr.mxu0 0.0
    %388 = vmatpush1.msra.mxu0 0.0
    %389 = vmatprep.subr.mxu0 0.0
    %390 = vmatpush1.msra.mxu0 0.0
    %391 = vmatprep.subr.mxu0 0.0
    %392 = vmatpush1.msra.mxu0 0.0
    %393 = vmatprep.subr.mxu0 0.0
    %394 = vmatpush1.msra.mxu0 0.0
    %395 = vmatprep.subr.mxu0 0.0
    %396 = vmatpush1.msra.mxu0 0.0
    %397 = vmatprep.subr.mxu0 0.0
    %398 = vmatpush1.msra.mxu0 0.0
    %399 = vmatprep.mubr.f32.mxu0 0.0
    %400 = vmatmul.mubr.f32.gmra.mrb[0].mxu0 %v333
    %v401 = vpop.f32.mrb[0].mxu0
    %v402 = vadd.f32 0.0, %v401
    %v403 = vpop.f32.mrb[0].mxu0
    %404 = vdwg.mxu0
    %v405 = vmul.f32 %v156, %v402
    %v406 = vsel %vm85, %v405, 0.0
    %407 = vadd.xlane.f32.xlu0 %v406
    %v408 = vpop.xlane.xlu0 %407
    %409 = vset.pattern.permute.xlu0 4
    %410 = vperm.xlu0 %409, %v64
    %v411 = vpop.permute.xlu0 %410
    %vm412 = vcmp.eq.s32.totalorder %v78, %v411
    %v413 = vsel %vm412, 1, 0
    %v414 = vcvt.s32.f32 %v413
    %v416 = vsel %vm165, %v414, 0
    %418 = vmatprep.subr.mxu0 0.0
    %419 = vmatpush1.msra.mxu0 %v69
    %420 = vmatprep.subr.mxu0 0.0
    %421 = vmatpush1.msra.mxu0 %v70
    %422 = vmatprep.subr.mxu0 0.0
    %423 = vmatpush1.msra.mxu0 %v71
    %424 = vmatprep.subr.mxu0 0.0
    %425 = vmatpush1.msra.mxu0 %v72
    %426 = vmatprep.subr.mxu0 0.0
    %427 = vmatpush1.msra.mxu0 %v73
    %428 = vmatprep.subr.mxu0 0.0
    %429 = vmatpush1.msra.mxu0 %v74
    %430 = vmatprep.subr.mxu0 0.0
    %431 = vmatpush1.msra.mxu0 %v75
    %432 = vmatprep.subr.mxu0 0.0
    %433 = vmatpush1.msra.mxu0 %v76
    %434 = vmatprep.subr.mxu0 0.0
    %435 = vmatpush1.msra.mxu0 0.0
    %436 = vmatprep.subr.mxu0 0.0
    %437 = vmatpush1.msra.mxu0 0.0
    %438 = vmatprep.subr.mxu0 0.0
    %439 = vmatpush1.msra.mxu0 0.0
    %440 = vmatprep.subr.mxu0 0.0
    %441 = vmatpush1.msra.mxu0 0.0
    %442 = vmatprep.subr.mxu0 0.0
    %443 = vmatpush1.msra.mxu0 0.0
    %444 = vmatprep.subr.mxu0 0.0
    %445 = vmatpush1.msra.mxu0 0.0
    %446 = vmatprep.subr.mxu0 0.0
    %447 = vmatpush1.msra.mxu0 0.0
    %448 = vmatprep.subr.mxu0 0.0
    %449 = vmatpush1.msra.mxu0 0.0
    %450 = vmatprep.subr.mxu0 0.0
    %451 = vmatpush1.msra.mxu0 0.0
    %452 = vmatprep.subr.mxu0 0.0
    %453 = vmatpush1.msra.mxu0 0.0
    %454 = vmatprep.subr.mxu0 0.0
    %455 = vmatpush1.msra.mxu0 0.0
    %456 = vmatprep.subr.mxu0 0.0
    %457 = vmatpush1.msra.mxu0 0.0
    %458 = vmatprep.subr.mxu0 0.0
    %459 = vmatpush1.msra.mxu0 0.0
    %460 = vmatprep.subr.mxu0 0.0
    %461 = vmatpush1.msra.mxu0 0.0
    %462 = vmatprep.subr.mxu0 0.0
    %463 = vmatpush1.msra.mxu0 0.0
    %464 = vmatprep.subr.mxu0 0.0
    %465 = vmatpush1.msra.mxu0 0.0
    %466 = vmatprep.subr.mxu0 0.0
    %467 = vmatpush1.msra.mxu0 0.0
    %468 = vmatprep.subr.mxu0 0.0
    %469 = vmatpush1.msra.mxu0 0.0
    %470 = vmatprep.subr.mxu0 0.0
    %471 = vmatpush1.msra.mxu0 0.0
    %472 = vmatprep.subr.mxu0 0.0
    %473 = vmatpush1.msra.mxu0 0.0
    %474 = vmatprep.subr.mxu0 0.0
    %475 = vmatpush1.msra.mxu0 0.0
    %476 = vmatprep.subr.mxu0 0.0
    %477 = vmatpush1.msra.mxu0 0.0
    %478 = vmatprep.subr.mxu0 0.0
    %479 = vmatpush1.msra.mxu0 0.0
    %480 = vmatprep.subr.mxu0 0.0
    %481 = vmatpush1.msra.mxu0 0.0
    %482 = vmatprep.mubr.f32.mxu0 0.0
    %483 = vmatmul.mubr.f32.gmra.mrb[0].mxu0 %v416
    %v484 = vpop.f32.mrb[0].mxu0
    %v485 = vadd.f32 0.0, %v484
    %v486 = vpop.f32.mrb[0].mxu0
    %487 = vdwg.mxu0
    %v488 = vmul.f32 %v156, %v485
    %v489 = vsel %vm85, %v488, 0.0
    %490 = vadd.xlane.f32.xlu0 %v489
    %v491 = vpop.xlane.xlu0 %490
    %492 = vset.pattern.permute.xlu0 5
    %493 = vperm.xlu0 %492, %v64
    %v494 = vpop.permute.xlu0 %493
    %vm495 = vcmp.eq.s32.totalorder %v78, %v494
    %v496 = vsel %vm495, 1, 0
    %v497 = vcvt.s32.f32 %v496
    %v499 = vsel %vm165, %v497, 0
    %501 = vmatprep.subr.mxu0 0.0
    %502 = vmatpush1.msra.mxu0 %v69
    %503 = vmatprep.subr.mxu0 0.0
    %504 = vmatpush1.msra.mxu0 %v70
    %505 = vmatprep.subr.mxu0 0.0
    %506 = vmatpush1.msra.mxu0 %v71
    %507 = vmatprep.subr.mxu0 0.0
    %508 = vmatpush1.msra.mxu0 %v72
    %509 = vmatprep.subr.mxu0 0.0
    %510 = vmatpush1.msra.mxu0 %v73
    %511 = vmatprep.subr.mxu0 0.0
    %512 = vmatpush1.msra.mxu0 %v74
    %513 = vmatprep.subr.mxu0 0.0
    %514 = vmatpush1.msra.mxu0 %v75
    %515 = vmatprep.subr.mxu0 0.0
    %516 = vmatpush1.msra.mxu0 %v76
    %517 = vmatprep.subr.mxu0 0.0
    %518 = vmatpush1.msra.mxu0 0.0
    %519 = vmatprep.subr.mxu0 0.0
    %520 = vmatpush1.msra.mxu0 0.0
    %521 = vmatprep.subr.mxu0 0.0
    %522 = vmatpush1.msra.mxu0 0.0
    %523 = vmatprep.subr.mxu0 0.0
    %524 = vmatpush1.msra.mxu0 0.0
    %525 = vmatprep.subr.mxu0 0.0
    %526 = vmatpush1.msra.mxu0 0.0
    %527 = vmatprep.subr.mxu0 0.0
    %528 = vmatpush1.msra.mxu0 0.0
    %529 = vmatprep.subr.mxu0 0.0
    %530 = vmatpush1.msra.mxu0 0.0
    %531 = vmatprep.subr.mxu0 0.0
    %532 = vmatpush1.msra.mxu0 0.0
    %533 = vmatprep.subr.mxu0 0.0
    %534 = vmatpush1.msra.mxu0 0.0
    %535 = vmatprep.subr.mxu0 0.0
    %536 = vmatpush1.msra.mxu0 0.0
    %537 = vmatprep.subr.mxu0 0.0
    %538 = vmatpush1.msra.mxu0 0.0
    %539 = vmatprep.subr.mxu0 0.0
    %540 = vmatpush1.msra.mxu0 0.0
    %541 = vmatprep.subr.mxu0 0.0
    %542 = vmatpush1.msra.mxu0 0.0
    %543 = vmatprep.subr.mxu0 0.0
    %544 = vmatpush1.msra.mxu0 0.0
    %545 = vmatprep.subr.mxu0 0.0
    %546 = vmatpush1.msra.mxu0 0.0
    %547 = vmatprep.subr.mxu0 0.0
    %548 = vmatpush1.msra.mxu0 0.0
    %549 = vmatprep.subr.mxu0 0.0
    %550 = vmatpush1.msra.mxu0 0.0
    %551 = vmatprep.subr.mxu0 0.0
    %552 = vmatpush1.msra.mxu0 0.0
    %553 = vmatprep.subr.mxu0 0.0
    %554 = vmatpush1.msra.mxu0 0.0
    %555 = vmatprep.subr.mxu0 0.0
    %556 = vmatpush1.msra.mxu0 0.0
    %557 = vmatprep.subr.mxu0 0.0
    %558 = vmatpush1.msra.mxu0 0.0
    %559 = vmatprep.subr.mxu0 0.0
    %560 = vmatpush1.msra.mxu0 0.0
    %561 = vmatprep.subr.mxu0 0.0
    %562 = vmatpush1.msra.mxu0 0.0
    %563 = vmatprep.subr.mxu0 0.0
    %564 = vmatpush1.msra.mxu0 0.0
    %565 = vmatprep.mubr.f32.mxu0 0.0
    %566 = vmatmul.mubr.f32.gmra.mrb[0].mxu0 %v499
    %v567 = vpop.f32.mrb[0].mxu0
    %v568 = vadd.f32 0.0, %v567
    %v569 = vpop.f32.mrb[0].mxu0
    %570 = vdwg.mxu0
    %v571 = vmul.f32 %v156, %v568
    %v572 = vsel %vm85, %v571, 0.0
    %573 = vadd.xlane.f32.xlu0 %v572
    %v574 = vpop.xlane.xlu0 %573
    %vm575 = vcmask 7168
    %v576 = vsel %vm575, %v242, %v325
    %vm577 = vcmask 15360
    %v578 = vsel %vm577, %v576, %v408
    %vm579 = vcmask 23552
    %v580 = vsel %vm579, %v578, %v491
    %vm581 = vcmask 31744
    %v582 = vsel %vm581, %v580, %v574
    %584 = vset.pattern.permute.xlu0 0
    %585 = vperm.xlu0 %584, %v582
    %v586 = vpop.permute.xlu0 %585
    %v588 = vsub.f32 %v586, %v582
    %v589 = vmin.f32 %v588, 0.0
    %v590 = vand.u32 2147483647, %v588
    %v591 = vsub.f32 0.0, %v590
    %v592 = vmul.f32 %v591, 1.442695
    %v593 = vpow.pop %v592
    %v594 = vadd.f32 %v593, 1.0
    %v595 = vlog2.pop %v594
    %v596 = vmul.f32 %v595, 0.6931472
    %v597 = vmul.f32 -0.5, %v593
    %v598 = vadd.f32 %v597, 1.0
    %v599 = vmul.f32 %v598, %v593
    %v600 = vand.u32 2147483647, %v593
    %vm601 = vcmp.lt.f32.partialorder %v600, 0.0004427343
    %v602 = vsel %vm601, %v599, %v596
    %v603 = vsub.f32 %v589, %v602
    %s604 = sadd.s32 0, 0
    %s605 = smul.u32 %s604, 8
    %s606 = sadd.s32 %s605, 8
    %p607 = scmp.le.s32.totalorder %s606, 8
    // Predicated region
    $region30: #{tpu_custom_call.1} parent=1 // pred_check
      %p608 = pneg %p607
    $region31: #{tpu_custom_call.1} parent=1 // pred_check_branch
      %610 = sbr.rel (%p608) target = $region33
    $region32: #{tpu_custom_call.1} parent=1 // pred_region
      %v611 = vld [vmem:[#allocation2] sm:$0x1]
      %vm612 = vcmask 39936
      %v613 = vsel %vm612, %v603, 0.0
      %v614 = vrot.slane %v613, 4
      %v615 = vadd.f32 %v613, %v614
      %v616 = vrot.slane %v615, 2
      %v617 = vadd.f32 %v615, %v616
      %v618 = vrot.slane %v617, 1
      %v619 = vadd.f32 %v617, %v618
      %v620 = vadd.f32 %v611, %v619
      %vm621 = vcmask 32768
      %622 = vst.msk [vmem:[#allocation2] sm:$0x1] %vm621, %v620
    $region33: #{tpu_custom_call.1} parent=1 // pred_fallthru
      _
    %p623 = scmp.gt.s32.totalorder %s606, 8
    // Predicated region
    $region34: #{tpu_custom_call.1} parent=1 // pred_check
      %p624 = pneg %p623
    $region35: #{tpu_custom_call.1} parent=1 // pred_check_branch
      %626 = sbr.rel (%p624) target = $region37
    $region36: #{tpu_custom_call.1} parent=1 // pred_region
      %v627 = vlaneseq
      %v628 = vshrl.u32 %v627, 7
      %v629 = vstv %s605
      %v630 = vadd.s32 %v628, %v629
      %v631 = vld [vmem:[#allocation2] sm:$0x1]
      %vm632 = vcmp.lt.s32.totalorder %v630, 8
      %v633 = vsel %vm632, 1, 0
      %vm634 = vcmp.eq.s32.totalorder %v633, 1
      %v635 = vsel %vm634, %v603, 0.0
      %vm636 = vcmask 39936
      %v637 = vsel %vm636, %v635, 0.0
      %v638 = vrot.slane %v637, 4
      %v639 = vadd.f32 %v637, %v638
      %v640 = vrot.slane %v639, 2
      %v641 = vadd.f32 %v639, %v640
      %v642 = vrot.slane %v641, 1
      %v643 = vadd.f32 %v641, %v642
      %v644 = vadd.f32 %v631, %v643
      %vm645 = vcmask 32768
      %646 = vst.msk [vmem:[#allocation2] sm:$0x1] %vm645, %v644
    $region37: #{tpu_custom_call.1} parent=1 // pred_fallthru
      _
    // Predicated region
    $region38: #{tpu_custom_call.1} parent=1 // pred_check
      %p647 = pneg %p58
    $region39: #{tpu_custom_call.1} parent=1 // pred_check_branch
      %649 = sbr.rel (%p647) target = $region41
    $region40: #{tpu_custom_call.1} parent=1 // pred_region
      %vm650 = vcmp.ge.s32.totalorder %v78, 1
      %v651 = vld [vmem:[#allocation2] sm:$0x1]
      %v652 = vsel %vm650, %v651, 0.0
      %vm653 = vcmask 32768
      %v654 = vsel %vm653, %v652, 0.0
      %655 = vadd.xlane.f32.xlu0 %v654
      %v656 = vpop.xlane.xlu0 %655
      %v657 = vrot.slane %v656, 4
      %v658 = vadd.f32 %v656, %v657
      %v659 = vrot.slane %v658, 2
      %v660 = vadd.f32 %v658, %v659
      %v661 = vrot.slane %v660, 1
      %v662 = vadd.f32 %v660, %v661
      %s663 = vtos %v662
      %v664 = vstv %s663
      %vm665 = vcmask 0
      %666 = vst.msk [vmem:[#allocation9] sm:$0x1] %vm665, %v664
    $region41: #{tpu_custom_call.1} parent=1 // pred_fallthru
      _
    // Predicated region
    $region42: #{tpu_custom_call.1} parent=1 // pred_check
      _
    $region43: #{tpu_custom_call.1} parent=1 // pred_check_branch
      %668 = sbr.rel (0) target = $region45
    $region44: #{tpu_custom_call.1} parent=1 // pred_region
      %s670 = ssub.s32 16, 16
      %671 = vsyncadd [#allocation5], %s670
      %s673 = sshll.u32 [#allocation9], 4
      %s674 = int_to_ptr.vmem [resolvable:$true] %s673
      %676 = dma.vmem_to_hbm [thread:$0]  %s674, 16, %s3, [#allocation5]
    $region45: #{tpu_custom_call.1} parent=1 // pred_fallthru
      _
    // Predicated region
    $region46: #{tpu_custom_call.1} parent=1 // pred_check
      _
    $region47: #{tpu_custom_call.1} parent=1 // pred_check_branch
      %678 = sbr.rel (0) target = $region49
    $region48: #{tpu_custom_call.1} parent=1 // pred_region
      %679 = dma.done [#allocation5], 16
    $region49: #{tpu_custom_call.1} parent=1 // pred_fallthru
      _
    %680 = vsyncpa [#allocation4], 1
    %681 = vsyncpa [#allocation7], 1
    %682 = vsyncpa [#allocation5], 1

</llo_original>
